<compile_context>
chip_gen: v6e
topology: v6e:2x2x1
jax: 0.10.0
libtpu: 0.0.40
codegen_flags: <defaults>
</compile_context>

<pallas_src>
import functools

import jax
import jax.numpy as jnp
from jax.experimental import pallas as pl
from jax.experimental.pallas import tpu as pltpu


def _localized_kernel(x_ref, adj_ref, rhs_ref, b1_ref, w2t_ref, b2_ref,
                      out_ref, taps_ref, *, t_len, block_batch):
    x = x_ref[...]                                   # (Bb*T, 128), f32 or bf16
    n_rows = x.shape[0]                              # Bb * T (static)

    # Within-clip time index of every packed row, (Bb*T, 1) int32 (constant across
    # lanes; jnp.where broadcasts it, so no full-width int32 map is held live).
    t_idx = jax.lax.broadcasted_iota(
        jnp.int32, (block_batch, t_len, 1), 1).reshape(n_rows, 1)

    # ---- im2col for Conv1d(k=5, pad=2), written straight into the VMEM scratch ----
    # Tap k (shift s = k-2): lane block k holds x[t+s]. Rows whose t+s falls outside
    # the clip (including rows that would leak into the neighbouring packed sample)
    # are zeroed by the validity mask. pltpu.roll is an XLU sublane rotation.
    for k in range(5):
        s = k - 2
        if s == 0:
            tap = x
        else:
            rolled = pltpu.roll(x, (-s) % n_rows, 0)            # rolled[r] = x[r + s]
            valid = jnp.logical_and(t_idx + s >= 0, t_idx + s < t_len)
            tap = jnp.where(valid, rolled, jnp.zeros_like(rolled))
        taps_ref[:, k * 128:(k + 1) * 128] = tap.astype(taps_ref.dtype)

    # ---- fused matmul: [conv proj | x @ W1^T] in ONE (Bb*T,640)x(640,64) dot ------
    fused = jnp.dot(taps_ref[...], rhs_ref[...],
                    preferred_element_type=jnp.float32)         # (Bb*T, 64)
    proj = fused[:, :32]                                        # Conv1d (bias folded into b1)
    hw = fused[:, 32:]                                          # x @ W1^T

    # ---- adjacency applied at (T, T) granularity (batched over the Bb samples) ----
    adj_b = jnp.broadcast_to(adj_ref[...][None, :, :],
                             (block_batch, t_len, t_len))       # hoisted once, reused twice
    dn = (((2,), (1,)), ((0,), (0,)))   # out[b,t,f] = sum_s adj[t,s] * h[b,s,f]

    h = jax.lax.dot_general(adj_b, hw.reshape(block_batch, t_len, 32), dn,
                            preferred_element_type=jnp.float32).reshape(n_rows, 32)
    h = jnp.maximum(h + proj + b1_ref[...], 0.0)                # gc1 + relu (dropout=id)

    # ---- gc2 (32 -> 32); identity skip folded into 2*W2 / 2*b2 on the host --------
    g = jnp.dot(h.astype(w2t_ref.dtype), w2t_ref[...],
                preferred_element_type=jnp.float32)             # (Bb*T, 32)
    g = jax.lax.dot_general(adj_b, g.reshape(block_batch, t_len, 32), dn,
                            preferred_element_type=jnp.float32).reshape(n_rows, 32)
    out_ref[...] = jnp.maximum(g + b2_ref[...], 0.0).astype(out_ref.dtype)


def _default_max_rows() -> int:
    """1024 rows/step on v5e/v6e; 512 on v7x (64 MiB VMEM per TensorCore)."""
    try:
        info = pltpu.get_tpu_info()
        if getattr(info, "vmem_capacity_bytes", 128 * 1024 * 1024) <= 64 * 1024 * 1024:
            return 512
    except Exception:
        pass
    return 1024


def _pick_block_batch(batch: int, t_len: int, max_rows: int, prefer_grid: int = 2) -> int:
    """Largest divisor of `batch` with Bb*T <= max_rows, preferring >= prefer_grid grid
    steps so both v7x TensorCores get work on the 'parallel' axis."""
    divisors = [d for d in range(1, batch + 1) if batch % d == 0]
    fits = [d for d in divisors if d * t_len <= max(max_rows, t_len)] or [1]
    multi = [d for d in fits if batch // d >= prefer_grid]
    return max(multi) if multi else max(fits)


def localized_branch(x_fused, params, *, sigma, gamma,
                     matmul_dtype=jnp.float32, input_dtype=None,
                     block_batch=None, max_rows=None):
    """x_fused: (B, T, 128) -> (B, T, 32) float32.

    matmul_dtype: MXU operand dtype for the weight/conv matmuls (accumulation always
        f32). bf16 is profitable on all generations (v5e's MXU is bf16-native) once
        accuracy is validated.
    input_dtype: storage/stream dtype of x. On v6e/v7x pass jnp.bfloat16 together with
        matmul_dtype=jnp.bfloat16 to halve the x DMA stream; keep f32 on v5e.
    """
    B, T, F_in = x_fused.shape
    assert F_in == 128, "LocalizedBranch expects 128 input features"
    assert T % 8 == 0, "clip length must be a multiple of 8 (sublane tile)"

    if max_rows is None:
        max_rows = _default_max_rows()
    if block_batch is None:
        block_batch = _pick_block_batch(B, T, max_rows)
    assert B % block_batch == 0
    bt = block_batch * T
    if input_dtype is None:
        input_dtype = x_fused.dtype

    # (T, T) positional adjacency -- shared by every sample; applied per-sample inside
    # the kernel (batched dot_general), so no quadratic block-diagonal copy is built.
    dist = jnp.arange(T, dtype=jnp.float32)
    dist = jnp.abs(dist[None, :] - dist[:, None])
    adj = jnp.exp(-(dist ** gamma) / sigma)                               # (T, T)

    # Host-side parameter prep:
    #  * conv taps stacked along K: rows [k*128:(k+1)*128] of cw = convw[:, :, k].T
    #  * W1^T fused into the same RHS (columns 32:64), non-zero only on the centre-tap
    #    rows 256:384  ->  one (640, 64) matmul yields [conv_proj | x @ W1^T].
    #  * conv bias folded into b1; identity skip (g = g + g) folded into 2*W2 / 2*b2.
    wd = matmul_dtype
    cw = jnp.transpose(params["convw"], (2, 1, 0)).reshape(5 * 128, 32)
    w1_blk = jnp.zeros((5 * 128, 32), jnp.float32).at[2 * 128:3 * 128, :].set(
        params["w1"].T)
    rhs = jnp.concatenate([cw, w1_blk], axis=1).astype(wd)                # (640, 64)
    b1c = (params["b1"] + params["convb"]).reshape(1, 32).astype(jnp.float32)
    w2t2 = (2.0 * params["w2"].T).astype(wd)                              # (32, 32)
    b22 = (2.0 * params["b2"]).reshape(1, 32).astype(jnp.float32)

    x2d = x_fused.reshape(B * T, 128).astype(input_dtype)

    kernel = functools.partial(_localized_kernel, t_len=T, block_batch=block_batch)
    out2d = pl.pallas_call(
        kernel,
        out_shape=jax.ShapeDtypeStruct((B * T, 32), jnp.float32),
        grid_spec=pltpu.PrefetchScalarGridSpec(
            num_scalar_prefetch=0,
            grid=(B // block_batch,),
            in_specs=[
                pl.BlockSpec((bt, 128), lambda i: (i, 0)),       # x (packed rows)
                pl.BlockSpec((T, T), lambda i: (0, 0)),          # adj, (T,T) only
                pl.BlockSpec((5 * 128, 64), lambda i: (0, 0)),   # [conv taps | W1^T]
                pl.BlockSpec((1, 32), lambda i: (0, 0)),         # b1 + conv_b
                pl.BlockSpec((32, 32), lambda i: (0, 0)),        # 2 * W2^T
                pl.BlockSpec((1, 32), lambda i: (0, 0)),         # 2 * b2
            ],
            out_specs=pl.BlockSpec((bt, 32), lambda i: (i, 0)),
            scratch_shapes=[pltpu.VMEM((bt, 5 * 128), wd)],      # im2col staging
        ),
        compiler_params=pltpu.CompilerParams(dimension_semantics=("parallel",)),
    )(x2d, adj, rhs, b1c, w2t2, b22)
    return out2d.reshape(B, T, 32)


def _init_params(key):
    """Deterministic parameter init mimicking the PyTorch module's shapes."""
    k1, k2, k3, k4 = jax.random.split(key, 4)
    # GraphConvolution(128, 32): W (32,128) xavier_uniform, bias = 0.1
    bound1 = (6.0 / (32 + 128)) ** 0.5
    w1 = jax.random.uniform(k1, (32, 128), jnp.float32, -bound1, bound1)
    b1 = jnp.full((32,), 0.1, jnp.float32)
    # proj = Conv1d(128, 32, k=5, pad=2): weight (32,128,5), bias (32,)
    fan_in = 128 * 5
    cb = 1.0 / (fan_in ** 0.5)
    convw = jax.random.uniform(k2, (32, 128, 5), jnp.float32, -cb, cb)
    convb = jax.random.uniform(k3, (32,), jnp.float32, -cb, cb)
    # GraphConvolution(32, 32): W (32,32) xavier_uniform, bias = 0.1
    bound2 = (6.0 / (32 + 32)) ** 0.5
    w2 = jax.random.uniform(k4, (32, 32), jnp.float32, -bound2, bound2)
    b2 = jnp.full((32,), 0.1, jnp.float32)
    return dict(w1=w1, b1=b1, convw=convw, convb=convb, w2=w2, b2=b2)


def _reference(x_fused, params, sigma, gamma):
    """Plain-JAX mirror of the exact PyTorch forward (eval mode)."""
    B, T, _ = x_fused.shape
    dist = jnp.arange(T, dtype=jnp.float32)
    dist = jnp.abs(dist[None, :] - dist[:, None])
    adj = jnp.exp(-(dist ** gamma) / sigma)                     # (T, T), shared by batch

    h = x_fused @ params["w1"].T
    h = jnp.einsum("ts,bsf->btf", adj, h) + params["b1"]
    xp = jnp.pad(x_fused, ((0, 0), (2, 2), (0, 0)))
    proj = params["convb"]
    for k in range(5):
        proj = proj + xp[:, k:k + T, :] @ params["convw"][:, :, k].T
    h = jax.nn.relu(h + proj)

    g = h @ params["w2"].T
    g = jnp.einsum("ts,bsf->btf", adj, g) + params["b2"]
    return jax.nn.relu(g + g)


if __name__ == "__main__":
    B, T, F_FUSED = 2, 16, 128
    SIGMA, GAMMA = 2.0, 1.0

    key = jax.random.PRNGKey(0)
    kx, kp = jax.random.split(key)
    x_fused = jax.random.normal(kx, (B, T, F_FUSED), jnp.float32)
    params = _init_params(kp)

    ref = _reference(x_fused, params, SIGMA, GAMMA)

    # f32 path, auto tiling (block_batch=1 -> grid=(2,), exercises both v7x cores).
    out = localized_branch(x_fused, params, sigma=SIGMA, gamma=GAMMA)
    out = jax.block_until_ready(out)
    assert out.shape == (B, T, 32)
    assert jnp.allclose(out, ref, rtol=1e-4, atol=2e-4), "mismatch vs reference (f32)"

    # f32 path, multi-sample packed block (block_batch=2 -> grid=(1,)): exercises the
    # cross-sample roll masking and the Bb>1 batched adjacency dot_general.
    out_p = jax.block_until_ready(
        localized_branch(x_fused, params, sigma=SIGMA, gamma=GAMMA, block_batch=2))
    assert jnp.allclose(out_p, ref, rtol=1e-4, atol=2e-4), "mismatch vs reference (packed)"

    # bf16 MXU operands (all generations), f32 accumulation -- loose smoke tolerance.
    out_bf16 = jax.block_until_ready(
        localized_branch(x_fused, params, sigma=SIGMA, gamma=GAMMA,
                         matmul_dtype=jnp.bfloat16))
    assert jnp.allclose(out_bf16, ref, rtol=1e-1, atol=5e-1), "mismatch vs reference (bf16)"

    print("KERNEL_OK")
</pallas_src>

<mosaic_0001>
module attributes {stable_mosaic.version = 11 : i64} {
  func.func @_localized_kernel(%arg0: i32, %arg1: memref<16x128xf32, #tpu.memory_space<vmem>>, %arg2: memref<16x16xf32, #tpu.memory_space<vmem>>, %arg3: memref<640x64xf32, #tpu.memory_space<vmem>>, %arg4: memref<1x32xf32, #tpu.memory_space<vmem>>, %arg5: memref<32x32xf32, #tpu.memory_space<vmem>>, %arg6: memref<1x32xf32, #tpu.memory_space<vmem>>, %arg7: memref<16x32xf32, #tpu.memory_space<vmem>>, %arg8: memref<16x640xf32, #tpu.memory_space<vmem>>) attributes {dimension_semantics = [#tpu.dimension_semantics<parallel>], iteration_bounds = array<i64: 2>, scalar_prefetch = 0 : i64, scratch_operands = 1 : i64, tpu.core_type = #tpu.core_type<tc>, window_params = [{transform_indices = @transform_0, window_bounds = array<i64: 16, 128>}, {pipeline_mode = #tpu.pipeline_mode<synchronous>, transform_indices = @transform_1, window_bounds = array<i64: 16, 16>}, {pipeline_mode = #tpu.pipeline_mode<synchronous>, transform_indices = @transform_2, window_bounds = array<i64: 640, 64>}, {pipeline_mode = #tpu.pipeline_mode<synchronous>, transform_indices = @transform_3, window_bounds = array<i64: 1, 32>}, {pipeline_mode = #tpu.pipeline_mode<synchronous>, transform_indices = @transform_4, window_bounds = array<i64: 32, 32>}, {pipeline_mode = #tpu.pipeline_mode<synchronous>, transform_indices = @transform_5, window_bounds = array<i64: 1, 32>}, {transform_indices = @transform_6, window_bounds = array<i64: 16, 32>}]} {
    %c0 = arith.constant 0 : index
    %c0_0 = arith.constant 0 : index
    %0 = vector.load %arg1[%c0, %c0_0] : memref<16x128xf32, #tpu.memory_space<vmem>>, vector<16x128xf32>
    %1 = tpu.iota {dimensions = array<i32: 1>} : vector<1x16x1xi32>
    %2 = vector.shape_cast %1 : vector<1x16x1xi32> to vector<16x1xi32>
    %c2_i32 = arith.constant 2 : i32
    %3 = tpu.dynamic_rotate %0 by %c2_i32 dim 0 : vector<16x128xf32>, i32 -> vector<16x128xf32>
    %c-2_i32 = arith.constant -2 : i32
    %4 = vector.broadcast %c-2_i32 : i32 to vector<16x1xi32>
    %5 = arith.addi %2, %4 : vector<16x1xi32>
    %c0_i32 = arith.constant 0 : i32
    %6 = vector.broadcast %c0_i32 : i32 to vector<16x1xi32>
    %7 = arith.cmpi sge, %5, %6 : vector<16x1xi32>
    %c-2_i32_1 = arith.constant -2 : i32
    %8 = vector.broadcast %c-2_i32_1 : i32 to vector<16x1xi32>
    %9 = arith.addi %2, %8 : vector<16x1xi32>
    %c16_i32 = arith.constant 16 : i32
    %10 = vector.broadcast %c16_i32 : i32 to vector<16x1xi32>
    %11 = arith.cmpi slt, %9, %10 : vector<16x1xi32>
    %12 = arith.andi %7, %11 : vector<16x1xi1>
    %cst = arith.constant 0.000000e+00 : f32
    %13 = vector.broadcast %cst : f32 to vector<16x128xf32>
    %14 = vector.shape_cast %12 : vector<16x1xi1> to vector<16x1xi1>
    %15 = vector.broadcast %14 : vector<16x1xi1> to vector<16x128xi1>
    %16 = arith.select %15, %3, %13 : vector<16x128xi1>, vector<16x128xf32>
    %c0_2 = arith.constant 0 : index
    %c0_3 = arith.constant 0 : index
    %17 = vector.load %arg8[%c0_2, %c0_3] : memref<16x640xf32, #tpu.memory_space<vmem>>, vector<16x128xf32>
    tpu.vector_store %arg8[%c0_2, %c0_3], %16 {strides = array<i32>} : memref<16x640xf32, #tpu.memory_space<vmem>>, vector<16x128xf32>,
    %c1_i32 = arith.constant 1 : i32
    %18 = tpu.dynamic_rotate %0 by %c1_i32 dim 0 : vector<16x128xf32>, i32 -> vector<16x128xf32>
    %c-1_i32 = arith.constant -1 : i32
    %19 = vector.broadcast %c-1_i32 : i32 to vector<16x1xi32>
    %20 = arith.addi %2, %19 : vector<16x1xi32>
    %c0_i32_4 = arith.constant 0 : i32
    %21 = vector.broadcast %c0_i32_4 : i32 to vector<16x1xi32>
    %22 = arith.cmpi sge, %20, %21 : vector<16x1xi32>
    %c-1_i32_5 = arith.constant -1 : i32
    %23 = vector.broadcast %c-1_i32_5 : i32 to vector<16x1xi32>
    %24 = arith.addi %2, %23 : vector<16x1xi32>
    %c16_i32_6 = arith.constant 16 : i32
    %25 = vector.broadcast %c16_i32_6 : i32 to vector<16x1xi32>
    %26 = arith.cmpi slt, %24, %25 : vector<16x1xi32>
    %27 = arith.andi %22, %26 : vector<16x1xi1>
    %cst_7 = arith.constant 0.000000e+00 : f32
    %28 = vector.broadcast %cst_7 : f32 to vector<16x128xf32>
    %29 = vector.shape_cast %27 : vector<16x1xi1> to vector<16x1xi1>
    %30 = vector.broadcast %29 : vector<16x1xi1> to vector<16x128xi1>
    %31 = arith.select %30, %18, %28 : vector<16x128xi1>, vector<16x128xf32>
    %c0_8 = arith.constant 0 : index
    %c128 = arith.constant 128 : index
    %32 = vector.load %arg8[%c0_8, %c128] : memref<16x640xf32, #tpu.memory_space<vmem>>, vector<16x128xf32>
    tpu.vector_store %arg8[%c0_8, %c128], %31 {strides = array<i32>} : memref<16x640xf32, #tpu.memory_space<vmem>>, vector<16x128xf32>,
    %c0_9 = arith.constant 0 : index
    %c256 = arith.constant 256 : index
    %33 = vector.load %arg8[%c0_9, %c256] : memref<16x640xf32, #tpu.memory_space<vmem>>, vector<16x128xf32>
    tpu.vector_store %arg8[%c0_9, %c256], %0 {strides = array<i32>} : memref<16x640xf32, #tpu.memory_space<vmem>>, vector<16x128xf32>,
    %c15_i32 = arith.constant 15 : i32
    %34 = tpu.dynamic_rotate %0 by %c15_i32 dim 0 : vector<16x128xf32>, i32 -> vector<16x128xf32>
    %c1_i32_10 = arith.constant 1 : i32
    %35 = vector.broadcast %c1_i32_10 : i32 to vector<16x1xi32>
    %36 = arith.addi %2, %35 : vector<16x1xi32>
    %c0_i32_11 = arith.constant 0 : i32
    %37 = vector.broadcast %c0_i32_11 : i32 to vector<16x1xi32>
    %38 = arith.cmpi sge, %36, %37 : vector<16x1xi32>
    %c1_i32_12 = arith.constant 1 : i32
    %39 = vector.broadcast %c1_i32_12 : i32 to vector<16x1xi32>
    %40 = arith.addi %2, %39 : vector<16x1xi32>
    %c16_i32_13 = arith.constant 16 : i32
    %41 = vector.broadcast %c16_i32_13 : i32 to vector<16x1xi32>
    %42 = arith.cmpi slt, %40, %41 : vector<16x1xi32>
    %43 = arith.andi %38, %42 : vector<16x1xi1>
    %cst_14 = arith.constant 0.000000e+00 : f32
    %44 = vector.broadcast %cst_14 : f32 to vector<16x128xf32>
    %45 = vector.shape_cast %43 : vector<16x1xi1> to vector<16x1xi1>
    %46 = vector.broadcast %45 : vector<16x1xi1> to vector<16x128xi1>
    %47 = arith.select %46, %34, %44 : vector<16x128xi1>, vector<16x128xf32>
    %c0_15 = arith.constant 0 : index
    %c384 = arith.constant 384 : index
    %48 = vector.load %arg8[%c0_15, %c384] : memref<16x640xf32, #tpu.memory_space<vmem>>, vector<16x128xf32>
    tpu.vector_store %arg8[%c0_15, %c384], %47 {strides = array<i32>} : memref<16x640xf32, #tpu.memory_space<vmem>>, vector<16x128xf32>,
    %c14_i32 = arith.constant 14 : i32
    %49 = tpu.dynamic_rotate %0 by %c14_i32 dim 0 : vector<16x128xf32>, i32 -> vector<16x128xf32>
    %c2_i32_16 = arith.constant 2 : i32
    %50 = vector.broadcast %c2_i32_16 : i32 to vector<16x1xi32>
    %51 = arith.addi %2, %50 : vector<16x1xi32>
    %c0_i32_17 = arith.constant 0 : i32
    %52 = vector.broadcast %c0_i32_17 : i32 to vector<16x1xi32>
    %53 = arith.cmpi sge, %51, %52 : vector<16x1xi32>
    %c2_i32_18 = arith.constant 2 : i32
    %54 = vector.broadcast %c2_i32_18 : i32 to vector<16x1xi32>
    %55 = arith.addi %2, %54 : vector<16x1xi32>
    %c16_i32_19 = arith.constant 16 : i32
    %56 = vector.broadcast %c16_i32_19 : i32 to vector<16x1xi32>
    %57 = arith.cmpi slt, %55, %56 : vector<16x1xi32>
    %58 = arith.andi %53, %57 : vector<16x1xi1>
    %cst_20 = arith.constant 0.000000e+00 : f32
    %59 = vector.broadcast %cst_20 : f32 to vector<16x128xf32>
    %60 = vector.shape_cast %58 : vector<16x1xi1> to vector<16x1xi1>
    %61 = vector.broadcast %60 : vector<16x1xi1> to vector<16x128xi1>
    %62 = arith.select %61, %49, %59 : vector<16x128xi1>, vector<16x128xf32>
    %c0_21 = arith.constant 0 : index
    %c512 = arith.constant 512 : index
    %63 = vector.load %arg8[%c0_21, %c512] : memref<16x640xf32, #tpu.memory_space<vmem>>, vector<16x128xf32>
    tpu.vector_store %arg8[%c0_21, %c512], %62 {strides = array<i32>} : memref<16x640xf32, #tpu.memory_space<vmem>>, vector<16x128xf32>,
    %c0_22 = arith.constant 0 : index
    %c0_23 = arith.constant 0 : index
    %64 = vector.load %arg8[%c0_22, %c0_23] : memref<16x640xf32, #tpu.memory_space<vmem>>, vector<16x640xf32>
    %c0_24 = arith.constant 0 : index
    %c0_25 = arith.constant 0 : index
    %65 = vector.load %arg3[%c0_24, %c0_25] : memref<640x64xf32, #tpu.memory_space<vmem>>, vector<640x64xf32>
    %cst_26 = arith.constant dense<0.000000e+00> : vector<16x64xf32>
    %66 = tpu.matmul %64, %65, %cst_26 {dimension_numbers = #tpu.dot_dimension_numbers<[1], [0], [0], [1], [0, 0, 1, 1], [], []>} : vector<16x640xf32>, vector<640x64xf32>, vector<16x64xf32> -> vector<16x64xf32>
    %67 = vector.extract_strided_slice %66 {offsets = [0, 0], sizes = [16, 32], strides = [1, 1]} : vector<16x64xf32> to vector<16x32xf32>
    %68 = vector.extract_strided_slice %66 {offsets = [0, 32], sizes = [16, 32], strides = [1, 1]} : vector<16x64xf32> to vector<16x32xf32>
    %c0_27 = arith.constant 0 : index
    %c0_28 = arith.constant 0 : index
    %69 = vector.load %arg2[%c0_27, %c0_28] : memref<16x16xf32, #tpu.memory_space<vmem>>, vector<16x16xf32>
    %70 = vector.shape_cast %69 : vector<16x16xf32> to vector<1x16x16xf32>
    %71 = vector.shape_cast %68 : vector<16x32xf32> to vector<1x16x32xf32>
    %cst_29 = arith.constant dense<0.000000e+00> : vector<1x16x32xf32>
    %72 = tpu.matmul %70, %71, %cst_29 {dimension_numbers = #tpu.dot_dimension_numbers<[2], [1], [1], [2], [0, 0, 0, 1, 1, 2], [0], [0]>} : vector<1x16x16xf32>, vector<1x16x32xf32>, vector<1x16x32xf32> -> vector<1x16x32xf32>
    %73 = vector.shape_cast %72 : vector<1x16x32xf32> to vector<16x32xf32>
    %74 = arith.addf %73, %67 : vector<16x32xf32>
    %c0_30 = arith.constant 0 : index
    %c0_31 = arith.constant 0 : index
    %75 = vector.load %arg4[%c0_30, %c0_31] : memref<1x32xf32, #tpu.memory_space<vmem>>, vector<1x32xf32>
    %76 = vector.broadcast %75 : vector<1x32xf32> to vector<16x32xf32>
    %77 = arith.addf %74, %76 : vector<16x32xf32>
    %cst_32 = arith.constant 0.000000e+00 : f32
    %78 = vector.broadcast %cst_32 : f32 to vector<16x32xf32>
    %79 = arith.maximumf %77, %78 : vector<16x32xf32>
    %c0_33 = arith.constant 0 : index
    %c0_34 = arith.constant 0 : index
    %80 = vector.load %arg5[%c0_33, %c0_34] : memref<32x32xf32, #tpu.memory_space<vmem>>, vector<32x32xf32>
    %cst_35 = arith.constant dense<0.000000e+00> : vector<16x32xf32>
    %81 = tpu.matmul %79, %80, %cst_35 {dimension_numbers = #tpu.dot_dimension_numbers<[1], [0], [0], [1], [0, 0, 1, 1], [], []>} : vector<16x32xf32>, vector<32x32xf32>, vector<16x32xf32> -> vector<16x32xf32>
    %82 = vector.shape_cast %81 : vector<16x32xf32> to vector<1x16x32xf32>
    %cst_36 = arith.constant dense<0.000000e+00> : vector<1x16x32xf32>
    %83 = tpu.matmul %70, %82, %cst_36 {dimension_numbers = #tpu.dot_dimension_numbers<[2], [1], [1], [2], [0, 0, 0, 1, 1, 2], [0], [0]>} : vector<1x16x16xf32>, vector<1x16x32xf32>, vector<1x16x32xf32> -> vector<1x16x32xf32>
    %84 = vector.shape_cast %83 : vector<1x16x32xf32> to vector<16x32xf32>
    %c0_37 = arith.constant 0 : index
    %c0_38 = arith.constant 0 : index
    %85 = vector.load %arg6[%c0_37, %c0_38] : memref<1x32xf32, #tpu.memory_space<vmem>>, vector<1x32xf32>
    %86 = vector.broadcast %85 : vector<1x32xf32> to vector<16x32xf32>
    %87 = arith.addf %84, %86 : vector<16x32xf32>
    %cst_39 = arith.constant 0.000000e+00 : f32
    %88 = vector.broadcast %cst_39 : f32 to vector<16x32xf32>
    %89 = arith.maximumf %87, %88 : vector<16x32xf32>
    %c0_40 = arith.constant 0 : index
    %c0_41 = arith.constant 0 : index
    %90 = vector.load %arg7[%c0_40, %c0_41] : memref<16x32xf32, #tpu.memory_space<vmem>>, vector<16x32xf32>
    tpu.vector_store %arg7[%c0_40, %c0_41], %89 {strides = array<i32>} : memref<16x32xf32, #tpu.memory_space<vmem>>, vector<16x32xf32>,
    return
  }
  func.func @transform_0(%arg0: i32) -> (i32, i32) {
    %c0_i32 = arith.constant 0 : i32
    %c0_i32_0 = arith.constant 0 : i32
    return %arg0, %c0_i32 : i32, i32
  }
  func.func @transform_1(%arg0: i32) -> (i32, i32) {
    %c0_i32 = arith.constant 0 : i32
    %c0_i32_0 = arith.constant 0 : i32
    %c0_i32_1 = arith.constant 0 : i32
    return %c0_i32, %c0_i32_0 : i32, i32
  }
  func.func @transform_2(%arg0: i32) -> (i32, i32) {
    %c0_i32 = arith.constant 0 : i32
    %c0_i32_0 = arith.constant 0 : i32
    %c0_i32_1 = arith.constant 0 : i32
    return %c0_i32, %c0_i32_0 : i32, i32
  }
  func.func @transform_3(%arg0: i32) -> (i32, i32) {
    %c0_i32 = arith.constant 0 : i32
    %c0_i32_0 = arith.constant 0 : i32
    %c0_i32_1 = arith.constant 0 : i32
    return %c0_i32, %c0_i32_0 : i32, i32
  }
  func.func @transform_4(%arg0: i32) -> (i32, i32) {
    %c0_i32 = arith.constant 0 : i32
    %c0_i32_0 = arith.constant 0 : i32
    %c0_i32_1 = arith.constant 0 : i32
    return %c0_i32, %c0_i32_0 : i32, i32
  }
  func.func @transform_5(%arg0: i32) -> (i32, i32) {
    %c0_i32 = arith.constant 0 : i32
    %c0_i32_0 = arith.constant 0 : i32
    %c0_i32_1 = arith.constant 0 : i32
    return %c0_i32, %c0_i32_0 : i32, i32
  }
  func.func @transform_6(%arg0: i32) -> (i32, i32) {
    %c0_i32 = arith.constant 0 : i32
    %c0_i32_0 = arith.constant 0 : i32
    return %arg0, %c0_i32 : i32, i32
  }
}

</mosaic_0001>

<llo_original>
// kernel: tpu_custom_call.1
$region0: #{tpu_custom_call.1}
  #allocation0 [shape = 'u32[]', space=smem, size = 0x4, offset = 0x4, fixed_abs, tag = 'smem constant byte address 0x4 - core index']
  #allocation1 [shape = 'u32[144,128]{1,0:T(1,128)}', space=vmem, size = 0x12000, scoped, tag = 'internal scratch']
  #allocation2 [shape = 'f32[16,640]{1,0:T(8,128)}', space=vmem, size = 0xa000, scoped, tag = 'scratch operand']
  %s0 = inlined_call_operand.vmem [shape: f32[32,128], index: 0, kind: input, shape index: {}]
  %s1 = inlined_call_operand.vmem [shape: f32[16,16], index: 1, kind: input, shape index: {}]
  %s2 = inlined_call_operand.vmem [shape: f32[640,64], index: 2, kind: input, shape index: {}]
  %s3 = inlined_call_operand.vmem [shape: f32[1,32], index: 3, kind: input, shape index: {}]
  %s4 = inlined_call_operand.vmem [shape: f32[32,32], index: 4, kind: input, shape index: {}]
  %s5 = inlined_call_operand.vmem [shape: f32[1,32], index: 5, kind: input, shape index: {}]
  %s6 = inlined_call_operand.hbm [shape: f32[32,32], index: 6, kind: output, shape index: {}]
  %s7 = sld [smem:[#allocation0]]
  $region57: #{tpu_custom_call.1} parent=0
    _
  %s9 = ssub.s32 1, %s7
  %s10 = scalar_select 0, %s9, %s7
  $region1: #{tpu_custom_call.1} parent=0
    #allocation3 [shape = 'u8[16384]{0}', space=vmem, size = 0x4000, scoped, tag = 'output window, operand 0']
    #allocation4 [shape = 's32[2]{0}', space=sflag, size = 0x8, scoped, tag = 'scoped memory for tpu_custom_call.1']
    %11 = vsyncpa [#allocation4], 0
    %s12 = scalar_lea.sflag [#allocation4], 1
    %13 = vsyncpa %s12, 0
    loop: start=0, step=1, limit=4
    $region2: #{tpu_custom_call.1} parent=1 // loop_pre_header
      _
    $region3: #{tpu_custom_call.1} parent=1 // loop_header
      %s15 = sphi 0, %s19
      %p16 = scmp.ge.s32.totalorder %s15, 4
      %s25 = sphi 0, %s27
      %s28 = sphi 0, %s25
      %s29 = sphi 0, %s28
      %s45 = sphi 0, %s29
      %s49 = sphi 0, %s49
      %s51 = sphi 0, %s49
      %s52 = sphi 0, %s51
      %s66 = sphi 0, %s52
      %s70 = sphi 0, %s70
      %s72 = sphi 0, %s70
      %s73 = sphi 0, %s72
      %s87 = sphi 0, %s73
      %s91 = sphi 0, %s91
      %s93 = sphi 0, %s91
      %s94 = sphi 0, %s93
      %s108 = sphi 0, %s94
      %s112 = sphi 0, %s112
      %s114 = sphi 0, %s112
      %s115 = sphi 0, %s114
      %s129 = sphi 0, %s115
      %s133 = sphi 0, %s133
      %s135 = sphi 0, %s133
      %s136 = sphi 0, %s135
      %s150 = sphi 0, %s136
      %s156 = sphi 0, %s158
      %s159 = sphi 0, %s156
      %s160 = sphi 0, %s159
      %s176 = sphi 0, %s160
    $region4: #{tpu_custom_call.1} parent=1 // loop_header_branch
      %18 = sbr.rel (%p16) target = $region8
    $region5: #{tpu_custom_call.1} parent=1 // loop_body
      %s20 = ssub.s32 %s15, 1
      %s21 = ssub.s32 %s15, 2
      %s22 = sadd.s32 %s15, 1
      %s23 = ssub.s32 %s15, %s22
      %p24 = scmp.eq.s32.totalorder %s23, 0
      %s26 = sadd.s32 %s25, 1
      %s27 = scalar_select %p24, %s25, %s26
      %p30 = pneg %p24
      %p31 = scmp.eq.s32.totalorder %s15, 1
      %p32 = por %p30, %p31
      %p33 = scmp.ne.s32.totalorder %s25, %s28
      %p34 = scmp.eq.s32.totalorder %s15, 0
      %p35 = por %p33, %p34
      %p36 = scmp.ne.s32.totalorder %s25, %s28
      %p37 = scmp.eq.s32.totalorder %s20, 1
      %p38 = por %p36, %p37
      %p39 = scmp.ne.s32.totalorder %s28, %s29
      %p40 = scmp.eq.s32.totalorder %s20, 0
      %p41 = por %p39, %p40
      %p42 = scmp.ne.s32.totalorder %s28, %s29
      %p43 = scmp.eq.s32.totalorder %s21, 1
      %p44 = por %p42, %p43
      %p46 = scmp.ne.s32.totalorder %s29, %s45
      %p47 = scmp.eq.s32.totalorder %s21, 0
      %p48 = por %p46, %p47
      %s50 = sadd.s32 %s49, 1
      %p53 = scmp.eq.s32.totalorder %s15, 1
      %p54 = scmp.ne.s32.totalorder %s49, %s51
      %p55 = scmp.eq.s32.totalorder %s15, 0
      %p56 = por %p54, %p55
      %p57 = scmp.ne.s32.totalorder %s49, %s51
      %p58 = scmp.eq.s32.totalorder %s20, 1
      %p59 = por %p57, %p58
      %p60 = scmp.ne.s32.totalorder %s51, %s52
      %p61 = scmp.eq.s32.totalorder %s20, 0
      %p62 = por %p60, %p61
      %p63 = scmp.ne.s32.totalorder %s51, %s52
      %p64 = scmp.eq.s32.totalorder %s21, 1
      %p65 = por %p63, %p64
      %p67 = scmp.ne.s32.totalorder %s52, %s66
      %p68 = scmp.eq.s32.totalorder %s21, 0
      %p69 = por %p67, %p68
      %s71 = sadd.s32 %s70, 1
      %p74 = scmp.eq.s32.totalorder %s15, 1
      %p75 = scmp.ne.s32.totalorder %s70, %s72
      %p76 = scmp.eq.s32.totalorder %s15, 0
      %p77 = por %p75, %p76
      %p78 = scmp.ne.s32.totalorder %s70, %s72
      %p79 = scmp.eq.s32.totalorder %s20, 1
      %p80 = por %p78, %p79
      %p81 = scmp.ne.s32.totalorder %s72, %s73
      %p82 = scmp.eq.s32.totalorder %s20, 0
      %p83 = por %p81, %p82
      %p84 = scmp.ne.s32.totalorder %s72, %s73
      %p85 = scmp.eq.s32.totalorder %s21, 1
      %p86 = por %p84, %p85
      %p88 = scmp.ne.s32.totalorder %s73, %s87
      %p89 = scmp.eq.s32.totalorder %s21, 0
      %p90 = por %p88, %p89
      %s92 = sadd.s32 %s91, 1
      %p95 = scmp.eq.s32.totalorder %s15, 1
      %p96 = scmp.ne.s32.totalorder %s91, %s93
      %p97 = scmp.eq.s32.totalorder %s15, 0
      %p98 = por %p96, %p97
      %p99 = scmp.ne.s32.totalorder %s91, %s93
      %p100 = scmp.eq.s32.totalorder %s20, 1
      %p101 = por %p99, %p100
      %p102 = scmp.ne.s32.totalorder %s93, %s94
      %p103 = scmp.eq.s32.totalorder %s20, 0
      %p104 = por %p102, %p103
      %p105 = scmp.ne.s32.totalorder %s93, %s94
      %p106 = scmp.eq.s32.totalorder %s21, 1
      %p107 = por %p105, %p106
      %p109 = scmp.ne.s32.totalorder %s94, %s108
      %p110 = scmp.eq.s32.totalorder %s21, 0
      %p111 = por %p109, %p110
      %s113 = sadd.s32 %s112, 1
      %p116 = scmp.eq.s32.totalorder %s15, 1
      %p117 = scmp.ne.s32.totalorder %s112, %s114
      %p118 = scmp.eq.s32.totalorder %s15, 0
      %p119 = por %p117, %p118
      %p120 = scmp.ne.s32.totalorder %s112, %s114
      %p121 = scmp.eq.s32.totalorder %s20, 1
      %p122 = por %p120, %p121
      %p123 = scmp.ne.s32.totalorder %s114, %s115
      %p124 = scmp.eq.s32.totalorder %s20, 0
      %p125 = por %p123, %p124
      %p126 = scmp.ne.s32.totalorder %s114, %s115
      %p127 = scmp.eq.s32.totalorder %s21, 1
      %p128 = por %p126, %p127
      %p130 = scmp.ne.s32.totalorder %s115, %s129
      %p131 = scmp.eq.s32.totalorder %s21, 0
      %p132 = por %p130, %p131
      %s134 = sadd.s32 %s133, 1
      %p137 = scmp.eq.s32.totalorder %s15, 1
      %p138 = scmp.ne.s32.totalorder %s133, %s135
      %p139 = scmp.eq.s32.totalorder %s15, 0
      %p140 = por %p138, %p139
      %p141 = scmp.ne.s32.totalorder %s133, %s135
      %p142 = scmp.eq.s32.totalorder %s20, 1
      %p143 = por %p141, %p142
      %p144 = scmp.ne.s32.totalorder %s135, %s136
      %p145 = scmp.eq.s32.totalorder %s20, 0
      %p146 = por %p144, %p145
      %p147 = scmp.ne.s32.totalorder %s135, %s136
      %p148 = scmp.eq.s32.totalorder %s21, 1
      %p149 = por %p147, %p148
      %p151 = scmp.ne.s32.totalorder %s136, %s150
      %p152 = scmp.eq.s32.totalorder %s21, 0
      %p153 = por %p151, %p152
      %s154 = ssub.s32 %s15, %s22
      %p155 = scmp.eq.s32.totalorder %s154, 0
      %s157 = sadd.s32 %s156, 1
      %s158 = scalar_select %p155, %s156, %s157
      %p161 = pneg %p155
      %p162 = scmp.eq.s32.totalorder %s15, 1
      %p163 = por %p161, %p162
      %p164 = scmp.ne.s32.totalorder %s156, %s159
      %p165 = scmp.eq.s32.totalorder %s15, 0
      %p166 = por %p164, %p165
      %p167 = scmp.ne.s32.totalorder %s156, %s159
      %p168 = scmp.eq.s32.totalorder %s20, 1
      %p169 = por %p167, %p168
      %p170 = scmp.ne.s32.totalorder %s159, %s160
      %p171 = scmp.eq.s32.totalorder %s20, 0
      %p172 = por %p170, %p171
      %p173 = scmp.ne.s32.totalorder %s159, %s160
      %p174 = scmp.eq.s32.totalorder %s21, 1
      %p175 = por %p173, %p174
      %p177 = scmp.ne.s32.totalorder %s160, %s176
      %p178 = scmp.eq.s32.totalorder %s21, 0
      %p179 = por %p177, %p178
      %p180 = scmp.le.s32.totalorder 1, %s15
      %p181 = scmp.lt.s32.totalorder %s15, 3
      %p182 = pnand %p180, %p181
      %p183 = pneg %p182
      // Predicated region
      $region9: #{tpu_custom_call.1} parent=5 // pred_check
        _
      $region10: #{tpu_custom_call.1} parent=5 // pred_check_branch
        %185 = sbr.rel (%p182) target = $region12
      $region11: #{tpu_custom_call.1} parent=5 // pred_region
        %s186 = ssub.s32 %s15, 1
        // Predicated region
        $region13: #{tpu_custom_call.1} parent=11 // pred_check
          %p187 = pneg %p62
        $region14: #{tpu_custom_call.1} parent=11 // pred_check_branch
          %189 = sbr.rel (%p187) target = $region16
        $region15: #{tpu_custom_call.1} parent=11 // pred_region
          _
        $region16: #{tpu_custom_call.1} parent=11 // pred_fallthru
          _
        // Predicated region
        $region17: #{tpu_custom_call.1} parent=11 // pred_check
          %p190 = pneg %p83
        $region18: #{tpu_custom_call.1} parent=11 // pred_check_branch
          %192 = sbr.rel (%p190) target = $region20
        $region19: #{tpu_custom_call.1} parent=11 // pred_region
          _
        $region20: #{tpu_custom_call.1} parent=11 // pred_fallthru
          _
        // Predicated region
        $region21: #{tpu_custom_call.1} parent=11 // pred_check
          %p193 = pneg %p104
        $region22: #{tpu_custom_call.1} parent=11 // pred_check_branch
          %195 = sbr.rel (%p193) target = $region24
        $region23: #{tpu_custom_call.1} parent=11 // pred_region
          _
        $region24: #{tpu_custom_call.1} parent=11 // pred_fallthru
          _
        // Predicated region
        $region25: #{tpu_custom_call.1} parent=11 // pred_check
          %p196 = pneg %p125
        $region26: #{tpu_custom_call.1} parent=11 // pred_check_branch
          %198 = sbr.rel (%p196) target = $region28
        $region27: #{tpu_custom_call.1} parent=11 // pred_region
          _
        $region28: #{tpu_custom_call.1} parent=11 // pred_fallthru
          _
        // Predicated region
        $region29: #{tpu_custom_call.1} parent=11 // pred_check
          %p199 = pneg %p146
        $region30: #{tpu_custom_call.1} parent=11 // pred_check_branch
          %201 = sbr.rel (%p199) target = $region32
        $region31: #{tpu_custom_call.1} parent=11 // pred_region
          _
        $region32: #{tpu_custom_call.1} parent=11 // pred_fallthru
          _
      $region12: #{tpu_custom_call.1} parent=5 // pred_fallthru
        _
      %p202 = scmp.lt.s32.totalorder %s15, 2
      // Predicated region
      $region33: #{tpu_custom_call.1} parent=5 // pred_check
        %p203 = pneg %p202
      $region34: #{tpu_custom_call.1} parent=5 // pred_check_branch
        %205 = sbr.rel (%p203) target = $region36
      $region35: #{tpu_custom_call.1} parent=5 // pred_region
        // Predicated region
        $region37: #{tpu_custom_call.1} parent=35 // pred_check
          %p206 = pneg %p35
        $region38: #{tpu_custom_call.1} parent=35 // pred_check_branch
          %208 = sbr.rel (%p206) target = $region40
        $region39: #{tpu_custom_call.1} parent=35 // pred_region
          %s209 = smul.u32 2, %s15
          %p210 = scmp.lt.s32.totalorder %s209, 3
          %s211 = scalar_select %p210, %s209, 3
          %s212 = smul.addr %s211, 8
          %s213 = scalar_lea.vmem %s0, %s212
          %s214 = smul.u32 2, %s15
        $region40: #{tpu_custom_call.1} parent=35 // pred_fallthru
          _
      $region36: #{tpu_custom_call.1} parent=5 // pred_fallthru
        _
      %p215 = scmp.le.s32.totalorder 1, %s15
      %p216 = scmp.lt.s32.totalorder %s15, 3
      %p217 = pnand %p215, %p216
      %p218 = pneg %p217
      // Predicated region
      $region41: #{tpu_custom_call.1} parent=5 // pred_check
        _
      $region42: #{tpu_custom_call.1} parent=5 // pred_check_branch
        %220 = sbr.rel (%p217) target = $region44
      $region43: #{tpu_custom_call.1} parent=5 // pred_region
        %s221 = ssub.s32 %s15, 1
        %s222 = smul.u32 2, %s20
        %p223 = scmp.lt.s32.totalorder %s222, 3
        %s224 = scalar_select %p223, %s222, 3
        %s225 = smul.addr %s224, 8
        %s226 = scalar_lea.vmem %s0, %s225
        %p227 = pneg %p41
        %p228 = pneg %p38
        %p229 = pneg %p62
        %p230 = pneg %p59
        %p231 = pneg %p83
        %p232 = pneg %p80
        %p233 = pneg %p104
        %p234 = pneg %p101
        %p235 = pneg %p125
        %p236 = pneg %p122
        %p237 = pneg %p146
        %p238 = pneg %p143
        %p239 = pneg %p172
        %p240 = pneg %p169
        %s241 = sand.u32 %s159, 1
        %s242 = scalar_lea.sflag [#allocation4], %s241
        %s243 = sand.u32 %s159, 1
        %s244 = smul.addr %s243, 16
        %s245 = scalar_lea.vmem [#allocation3], %s244
        %s246 = smul.u32 2, %s20
        %p247 = scmp.lt.s32.totalorder %s246, 3
        %s248 = scalar_select %p247, %s246, 3
        %s249 = smul.addr %s248, 8
        %s250 = scalar_lea.vmem %s0, %s249
        %s251 = smul.u32 2, %s20
        %s252 = smul.u32 2, %s20
        %v253 = vld [vmem:[%s250] sm:$0xff]
        %v254 = vld [vmem:[%s250 + $0x8] sm:$0xff]
        %v255 = vlaneseq
        %v256 = vshrl.u32 %v255, 7
        %v257 = vadd.s32 %v256, 8
        %v258 = vrot.slane %v253, 6
        %v259 = vrot.slane %v254, 6
        %vm260 = vcmp.lt.s32.totalorder %v256, 2
        %v261 = vsel %vm260, %v258, %v259
        %v262 = vsel %vm260, %v259, %v258
        %v263 = vadd.s32 %v256, 4294967294
        %v264 = vadd.s32 %v257, 4294967294
        %vm265 = vcmp.ge.s32.totalorder %v263, 0
        %vm266 = vcmp.ge.s32.totalorder %v264, 0
        %vm267 = vcmp.lt.s32.totalorder %v263, 16
        %vm268 = vcmp.lt.s32.totalorder %v264, 16
        %vm269 = vmand %vm265, %vm267
        %vm270 = vmand %vm266, %vm268
        %v271 = vsel %vm269, 1, 0
        %v272 = vsel %vm270, 1, 0
        %vm273 = vcmp.eq.s32.totalorder %v271, 1
        %vm274 = vcmp.eq.s32.totalorder %v272, 1
        %v275 = vsel %vm273, %v262, 0.0
        %v276 = vsel %vm274, %v261, 0.0
        %277 = vst [vmem:[#allocation2] sm:$0xff] %v275
        %278 = vst [vmem:[#allocation2 + $0x28] sm:$0xff] %v276
        %v279 = vrot.slane %v253, 7
        %v280 = vrot.slane %v254, 7
        %vm281 = vcmp.lt.s32.totalorder %v256, 1
        %v282 = vsel %vm281, %v279, %v280
        %v283 = vsel %vm281, %v280, %v279
        %v284 = vadd.s32 %v256, 4294967295
        %v285 = vadd.s32 %v257, 4294967295
        %vm286 = vcmp.ge.s32.totalorder %v284, 0
        %vm287 = vcmp.ge.s32.totalorder %v285, 0
        %vm288 = vcmp.lt.s32.totalorder %v284, 16
        %vm289 = vcmp.lt.s32.totalorder %v285, 16
        %vm290 = vmand %vm286, %vm288
        %vm291 = vmand %vm287, %vm289
        %v292 = vsel %vm290, 1, 0
        %v293 = vsel %vm291, 1, 0
        %vm294 = vcmp.eq.s32.totalorder %v292, 1
        %vm295 = vcmp.eq.s32.totalorder %v293, 1
        %v296 = vsel %vm294, %v283, 0.0
        %v297 = vsel %vm295, %v282, 0.0
        %298 = vst [vmem:[#allocation2 + $0x8] sm:$0xff] %v296
        %299 = vst [vmem:[#allocation2 + $0x30] sm:$0xff] %v297
        %300 = vst [vmem:[#allocation2 + $0x10] sm:$0xff] %v253
        %301 = vst [vmem:[#allocation2 + $0x38] sm:$0xff] %v254
        %v302 = vrot.slane %v253, 1
        %v303 = vrot.slane %v254, 1
        %vm304 = vcmp.lt.s32.totalorder %v256, 7
        %v305 = vsel %vm304, %v302, %v303
        %v306 = vsel %vm304, %v303, %v302
        %v307 = vadd.s32 %v256, 1
        %v308 = vadd.s32 %v257, 1
        %vm309 = vcmp.ge.s32.totalorder %v307, 0
        %vm310 = vcmp.ge.s32.totalorder %v308, 0
        %vm311 = vcmp.lt.s32.totalorder %v307, 16
        %vm312 = vcmp.lt.s32.totalorder %v308, 16
        %vm313 = vmand %vm309, %vm311
        %vm314 = vmand %vm310, %vm312
        %v315 = vsel %vm313, 1, 0
        %v316 = vsel %vm314, 1, 0
        %vm317 = vcmp.eq.s32.totalorder %v315, 1
        %vm318 = vcmp.eq.s32.totalorder %v316, 1
        %v319 = vsel %vm317, %v305, 0.0
        %v320 = vsel %vm318, %v306, 0.0
        %321 = vst [vmem:[#allocation2 + $0x18] sm:$0xff] %v319
        %322 = vst [vmem:[#allocation2 + $0x40] sm:$0xff] %v320
        %v323 = vrot.slane %v253, 2
        %v324 = vrot.slane %v254, 2
        %vm325 = vcmp.lt.s32.totalorder %v256, 6
        %v326 = vsel %vm325, %v323, %v324
        %v327 = vsel %vm325, %v324, %v323
        %v328 = vadd.s32 %v256, 2
        %v329 = vadd.s32 %v257, 2
        %vm330 = vcmp.ge.s32.totalorder %v328, 0
        %vm331 = vcmp.ge.s32.totalorder %v329, 0
        %vm332 = vcmp.lt.s32.totalorder %v328, 16
        %vm333 = vcmp.lt.s32.totalorder %v329, 16
        %vm334 = vmand %vm330, %vm332
        %vm335 = vmand %vm331, %vm333
        %v336 = vsel %vm334, 1, 0
        %v337 = vsel %vm335, 1, 0
        %vm338 = vcmp.eq.s32.totalorder %v336, 1
        %vm339 = vcmp.eq.s32.totalorder %v337, 1
        %v340 = vsel %vm338, %v326, 0.0
        %v341 = vsel %vm339, %v327, 0.0
        %342 = vst [vmem:[#allocation2 + $0x20] sm:$0xff] %v340
        %343 = vst [vmem:[#allocation2 + $0x48] sm:$0xff] %v341
        %v344 = vld [vmem:[#allocation2] sm:$0xff]
        %v345 = vld [vmem:[#allocation2 + $0x8] sm:$0xff]
        %v346 = vld [vmem:[#allocation2 + $0x10] sm:$0xff]
        %v347 = vld [vmem:[#allocation2 + $0x18] sm:$0xff]
        %v348 = vld [vmem:[#allocation2 + $0x20] sm:$0xff]
        %v349 = vld [vmem:[#allocation2 + $0x28] sm:$0xff]
        %v350 = vld [vmem:[#allocation2 + $0x30] sm:$0xff]
        %v351 = vld [vmem:[#allocation2 + $0x38] sm:$0xff]
        %v352 = vld [vmem:[#allocation2 + $0x40] sm:$0xff]
        %v353 = vld [vmem:[#allocation2 + $0x48] sm:$0xff]
        %v354 = vld [vmem:[%s2] sm:$0xff]
        %v355 = vld [vmem:[%s2 + $0x8] sm:$0xff]
        %v356 = vld [vmem:[%s2 + $0x10] sm:$0xff]
        %v357 = vld [vmem:[%s2 + $0x18] sm:$0xff]
        %v358 = vld [vmem:[%s2 + $0x20] sm:$0xff]
        %v359 = vld [vmem:[%s2 + $0x28] sm:$0xff]
        %v360 = vld [vmem:[%s2 + $0x30] sm:$0xff]
        %v361 = vld [vmem:[%s2 + $0x38] sm:$0xff]
        %v362 = vld [vmem:[%s2 + $0x40] sm:$0xff]
        %v363 = vld [vmem:[%s2 + $0x48] sm:$0xff]
        %v364 = vld [vmem:[%s2 + $0x50] sm:$0xff]
        %v365 = vld [vmem:[%s2 + $0x58] sm:$0xff]
        %v366 = vld [vmem:[%s2 + $0x60] sm:$0xff]
        %v367 = vld [vmem:[%s2 + $0x68] sm:$0xff]
        %v368 = vld [vmem:[%s2 + $0x70] sm:$0xff]
        %v369 = vld [vmem:[%s2 + $0x78] sm:$0xff]
        %v370 = vld [vmem:[%s2 + $0x80] sm:$0xff]
        %v371 = vld [vmem:[%s2 + $0x88] sm:$0xff]
        %v372 = vld [vmem:[%s2 + $0x90] sm:$0xff]
        %v373 = vld [vmem:[%s2 + $0x98] sm:$0xff]
        %v374 = vld [vmem:[%s2 + $0xa0] sm:$0xff]
        %v375 = vld [vmem:[%s2 + $0xa8] sm:$0xff]
        %v376 = vld [vmem:[%s2 + $0xb0] sm:$0xff]
        %v377 = vld [vmem:[%s2 + $0xb8] sm:$0xff]
        %v378 = vld [vmem:[%s2 + $0xc0] sm:$0xff]
        %v379 = vld [vmem:[%s2 + $0xc8] sm:$0xff]
        %v380 = vld [vmem:[%s2 + $0xd0] sm:$0xff]
        %v381 = vld [vmem:[%s2 + $0xd8] sm:$0xff]
        %v382 = vld [vmem:[%s2 + $0xe0] sm:$0xff]
        %v383 = vld [vmem:[%s2 + $0xe8] sm:$0xff]
        %v384 = vld [vmem:[%s2 + $0xf0] sm:$0xff]
        %v385 = vld [vmem:[%s2 + $0xf8] sm:$0xff]
        %v386 = vld [vmem:[%s2 + $0x100] sm:$0xff]
        %v387 = vld [vmem:[%s2 + $0x108] sm:$0xff]
        %v388 = vld [vmem:[%s2 + $0x110] sm:$0xff]
        %v389 = vld [vmem:[%s2 + $0x118] sm:$0xff]
        %v390 = vld [vmem:[%s2 + $0x120] sm:$0xff]
        %v391 = vld [vmem:[%s2 + $0x128] sm:$0xff]
        %v392 = vld [vmem:[%s2 + $0x130] sm:$0xff]
        %v393 = vld [vmem:[%s2 + $0x138] sm:$0xff]
        %v394 = vld [vmem:[%s2 + $0x140] sm:$0xff]
        %v395 = vld [vmem:[%s2 + $0x148] sm:$0xff]
        %v396 = vld [vmem:[%s2 + $0x150] sm:$0xff]
        %v397 = vld [vmem:[%s2 + $0x158] sm:$0xff]
        %v398 = vld [vmem:[%s2 + $0x160] sm:$0xff]
        %v399 = vld [vmem:[%s2 + $0x168] sm:$0xff]
        %v400 = vld [vmem:[%s2 + $0x170] sm:$0xff]
        %v401 = vld [vmem:[%s2 + $0x178] sm:$0xff]
        %v402 = vld [vmem:[%s2 + $0x180] sm:$0xff]
        %v403 = vld [vmem:[%s2 + $0x188] sm:$0xff]
        %v404 = vld [vmem:[%s2 + $0x190] sm:$0xff]
        %v405 = vld [vmem:[%s2 + $0x198] sm:$0xff]
        %v406 = vld [vmem:[%s2 + $0x1a0] sm:$0xff]
        %v407 = vld [vmem:[%s2 + $0x1a8] sm:$0xff]
        %v408 = vld [vmem:[%s2 + $0x1b0] sm:$0xff]
        %v409 = vld [vmem:[%s2 + $0x1b8] sm:$0xff]
        %v410 = vld [vmem:[%s2 + $0x1c0] sm:$0xff]
        %v411 = vld [vmem:[%s2 + $0x1c8] sm:$0xff]
        %v412 = vld [vmem:[%s2 + $0x1d0] sm:$0xff]
        %v413 = vld [vmem:[%s2 + $0x1d8] sm:$0xff]
        %v414 = vld [vmem:[%s2 + $0x1e0] sm:$0xff]
        %v415 = vld [vmem:[%s2 + $0x1e8] sm:$0xff]
        %v416 = vld [vmem:[%s2 + $0x1f0] sm:$0xff]
        %v417 = vld [vmem:[%s2 + $0x1f8] sm:$0xff]
        %v418 = vld [vmem:[%s2 + $0x200] sm:$0xff]
        %v419 = vld [vmem:[%s2 + $0x208] sm:$0xff]
        %v420 = vld [vmem:[%s2 + $0x210] sm:$0xff]
        %v421 = vld [vmem:[%s2 + $0x218] sm:$0xff]
        %v422 = vld [vmem:[%s2 + $0x220] sm:$0xff]
        %v423 = vld [vmem:[%s2 + $0x228] sm:$0xff]
        %v424 = vld [vmem:[%s2 + $0x230] sm:$0xff]
        %v425 = vld [vmem:[%s2 + $0x238] sm:$0xff]
        %v426 = vld [vmem:[%s2 + $0x240] sm:$0xff]
        %v427 = vld [vmem:[%s2 + $0x248] sm:$0xff]
        %v428 = vld [vmem:[%s2 + $0x250] sm:$0xff]
        %v429 = vld [vmem:[%s2 + $0x258] sm:$0xff]
        %v430 = vld [vmem:[%s2 + $0x260] sm:$0xff]
        %v431 = vld [vmem:[%s2 + $0x268] sm:$0xff]
        %v432 = vld [vmem:[%s2 + $0x270] sm:$0xff]
        %v433 = vld [vmem:[%s2 + $0x278] sm:$0xff]
        %434 = vmatprep.subr.mxu0 0.0
        %435 = vmatpush1.msra.mxu0 %v369
        %436 = vmatprep.subr.mxu0 0.0
        %437 = vmatpush1.msra.mxu0 %v368
        %438 = vmatprep.subr.mxu0 0.0
        %439 = vmatpush1.msra.mxu0 %v367
        %440 = vmatprep.subr.mxu0 0.0
        %441 = vmatpush1.msra.mxu0 %v366
        %442 = vmatprep.subr.mxu0 0.0
        %443 = vmatpush1.msra.mxu0 %v365
        %444 = vmatprep.subr.mxu0 0.0
        %445 = vmatpush1.msra.mxu0 %v364
        %446 = vmatprep.subr.mxu0 0.0
        %447 = vmatpush1.msra.mxu0 %v363
        %448 = vmatprep.subr.mxu0 0.0
        %449 = vmatpush1.msra.mxu0 %v362
        %450 = vmatprep.subr.mxu0 0.0
        %451 = vmatpush1.msra.mxu0 %v361
        %452 = vmatprep.subr.mxu0 0.0
        %453 = vmatpush1.msra.mxu0 %v360
        %454 = vmatprep.subr.mxu0 0.0
        %455 = vmatpush1.msra.mxu0 %v359
        %456 = vmatprep.subr.mxu0 0.0
        %457 = vmatpush1.msra.mxu0 %v358
        %458 = vmatprep.subr.mxu0 0.0
        %459 = vmatpush1.msra.mxu0 %v357
        %460 = vmatprep.subr.mxu0 0.0
        %461 = vmatpush1.msra.mxu0 %v356
        %462 = vmatprep.subr.mxu0 0.0
        %463 = vmatpush1.msra.mxu0 %v355
        %464 = vmatprep.subr.mxu0 0.0
        %465 = vmatpush1.msra.mxu0 %v354
        %466 = vmatprep.subr.mxu0 0.0
        %467 = vmatpush2.msra.mxu0 %v385
        %468 = vmatprep.subr.mxu0 0.0
        %469 = vmatpush2.msra.mxu0 %v384
        %470 = vmatprep.subr.mxu0 0.0
        %471 = vmatpush2.msra.mxu0 %v383
        %472 = vmatprep.subr.mxu0 0.0
        %473 = vmatpush2.msra.mxu0 %v382
        %474 = vmatprep.subr.mxu0 0.0
        %475 = vmatpush2.msra.mxu0 %v381
        %476 = vmatprep.subr.mxu0 0.0
        %477 = vmatpush2.msra.mxu0 %v380
        %478 = vmatprep.subr.mxu0 0.0
        %479 = vmatpush2.msra.mxu0 %v379
        %480 = vmatprep.subr.mxu0 0.0
        %481 = vmatpush2.msra.mxu0 %v378
        %482 = vmatprep.subr.mxu0 0.0
        %483 = vmatpush2.msra.mxu0 %v377
        %484 = vmatprep.subr.mxu0 0.0
        %485 = vmatpush2.msra.mxu0 %v376
        %486 = vmatprep.subr.mxu0 0.0
        %487 = vmatpush2.msra.mxu0 %v375
        %488 = vmatprep.subr.mxu0 0.0
        %489 = vmatpush2.msra.mxu0 %v374
        %490 = vmatprep.subr.mxu0 0.0
        %491 = vmatpush2.msra.mxu0 %v373
        %492 = vmatprep.subr.mxu0 0.0
        %493 = vmatpush2.msra.mxu0 %v372
        %494 = vmatprep.subr.mxu0 0.0
        %495 = vmatpush2.msra.mxu0 %v371
        %496 = vmatprep.subr.mxu0 0.0
        %497 = vmatpush2.msra.mxu0 %v370
        %498 = vmatprep.mubr.f32.mxu0 %v345
        %499 = vmatmul.mubr.f32.gmra.mxu0 %v344
        %v500 = vpop.f32.mrf.mxu0
        %v501 = vadd.f32 0.0, %v500
        %v502 = vpop.f32.mrf.mxu0
        %503 = vmatprep.mubr.f32.mxu0 %v350
        %504 = vmatmul.mubr.f32.gmra.mxu0 %v349
        %v505 = vpop.f32.mrf.mxu0
        %v506 = vadd.f32 0.0, %v505
        %v507 = vpop.f32.mrf.mxu0
        %508 = vdwg.mxu0
        %509 = vmatprep.subr.mxu0 0.0
        %510 = vmatpush1.msra.mxu0 %v401
        %511 = vmatprep.subr.mxu0 0.0
        %512 = vmatpush1.msra.mxu0 %v400
        %513 = vmatprep.subr.mxu0 0.0
        %514 = vmatpush1.msra.mxu0 %v399
        %515 = vmatprep.subr.mxu0 0.0
        %516 = vmatpush1.msra.mxu0 %v398
        %517 = vmatprep.subr.mxu0 0.0
        %518 = vmatpush1.msra.mxu0 %v397
        %519 = vmatprep.subr.mxu0 0.0
        %520 = vmatpush1.msra.mxu0 %v396
        %521 = vmatprep.subr.mxu0 0.0
        %522 = vmatpush1.msra.mxu0 %v395
        %523 = vmatprep.subr.mxu0 0.0
        %524 = vmatpush1.msra.mxu0 %v394
        %525 = vmatprep.subr.mxu0 0.0
        %526 = vmatpush1.msra.mxu0 %v393
        %527 = vmatprep.subr.mxu0 0.0
        %528 = vmatpush1.msra.mxu0 %v392
        %529 = vmatprep.subr.mxu0 0.0
        %530 = vmatpush1.msra.mxu0 %v391
        %531 = vmatprep.subr.mxu0 0.0
        %532 = vmatpush1.msra.mxu0 %v390
        %533 = vmatprep.subr.mxu0 0.0
        %534 = vmatpush1.msra.mxu0 %v389
        %535 = vmatprep.subr.mxu0 0.0
        %536 = vmatpush1.msra.mxu0 %v388
        %537 = vmatprep.subr.mxu0 0.0
        %538 = vmatpush1.msra.mxu0 %v387
        %539 = vmatprep.subr.mxu0 0.0
        %540 = vmatpush1.msra.mxu0 %v386
        %541 = vmatprep.subr.mxu0 0.0
        %542 = vmatpush2.msra.mxu0 %v417
        %543 = vmatprep.subr.mxu0 0.0
        %544 = vmatpush2.msra.mxu0 %v416
        %545 = vmatprep.subr.mxu0 0.0
        %546 = vmatpush2.msra.mxu0 %v415
        %547 = vmatprep.subr.mxu0 0.0
        %548 = vmatpush2.msra.mxu0 %v414
        %549 = vmatprep.subr.mxu0 0.0
        %550 = vmatpush2.msra.mxu0 %v413
        %551 = vmatprep.subr.mxu0 0.0
        %552 = vmatpush2.msra.mxu0 %v412
        %553 = vmatprep.subr.mxu0 0.0
        %554 = vmatpush2.msra.mxu0 %v411
        %555 = vmatprep.subr.mxu0 0.0
        %556 = vmatpush2.msra.mxu0 %v410
        %557 = vmatprep.subr.mxu0 0.0
        %558 = vmatpush2.msra.mxu0 %v409
        %559 = vmatprep.subr.mxu0 0.0
        %560 = vmatpush2.msra.mxu0 %v408
        %561 = vmatprep.subr.mxu0 0.0
        %562 = vmatpush2.msra.mxu0 %v407
        %563 = vmatprep.subr.mxu0 0.0
        %564 = vmatpush2.msra.mxu0 %v406
        %565 = vmatprep.subr.mxu0 0.0
        %566 = vmatpush2.msra.mxu0 %v405
        %567 = vmatprep.subr.mxu0 0.0
        %568 = vmatpush2.msra.mxu0 %v404
        %569 = vmatprep.subr.mxu0 0.0
        %570 = vmatpush2.msra.mxu0 %v403
        %571 = vmatprep.subr.mxu0 0.0
        %572 = vmatpush2.msra.mxu0 %v402
        %573 = vmatprep.mubr.f32.mxu0 %v347
        %574 = vmatmul.mubr.f32.gmra.mxu0 %v346
        %v575 = vpop.f32.mrf.mxu0
        %v576 = vadd.f32 %v501, %v575
        %v577 = vpop.f32.mrf.mxu0
        %578 = vmatprep.mubr.f32.mxu0 %v352
        %579 = vmatmul.mubr.f32.gmra.mxu0 %v351
        %v580 = vpop.f32.mrf.mxu0
        %v581 = vadd.f32 %v506, %v580
        %v582 = vpop.f32.mrf.mxu0
        %583 = vdwg.mxu0
        %584 = vmatprep.subr.mxu0 0.0
        %585 = vmatpush1.msra.mxu0 %v433
        %586 = vmatprep.subr.mxu0 0.0
        %587 = vmatpush1.msra.mxu0 %v432
        %588 = vmatprep.subr.mxu0 0.0
        %589 = vmatpush1.msra.mxu0 %v431
        %590 = vmatprep.subr.mxu0 0.0
        %591 = vmatpush1.msra.mxu0 %v430
        %592 = vmatprep.subr.mxu0 0.0
        %593 = vmatpush1.msra.mxu0 %v429
        %594 = vmatprep.subr.mxu0 0.0
        %595 = vmatpush1.msra.mxu0 %v428
        %596 = vmatprep.subr.mxu0 0.0
        %597 = vmatpush1.msra.mxu0 %v427
        %598 = vmatprep.subr.mxu0 0.0
        %599 = vmatpush1.msra.mxu0 %v426
        %600 = vmatprep.subr.mxu0 0.0
        %601 = vmatpush1.msra.mxu0 %v425
        %602 = vmatprep.subr.mxu0 0.0
        %603 = vmatpush1.msra.mxu0 %v424
        %604 = vmatprep.subr.mxu0 0.0
        %605 = vmatpush1.msra.mxu0 %v423
        %606 = vmatprep.subr.mxu0 0.0
        %607 = vmatpush1.msra.mxu0 %v422
        %608 = vmatprep.subr.mxu0 0.0
        %609 = vmatpush1.msra.mxu0 %v421
        %610 = vmatprep.subr.mxu0 0.0
        %611 = vmatpush1.msra.mxu0 %v420
        %612 = vmatprep.subr.mxu0 0.0
        %613 = vmatpush1.msra.mxu0 %v419
        %614 = vmatprep.subr.mxu0 0.0
        %615 = vmatpush1.msra.mxu0 %v418
        %616 = vmatprep.subr.mxu0 0.0
        %617 = vmatpush2.msra.mxu0 0.0
        %618 = vmatprep.subr.mxu0 0.0
        %619 = vmatpush2.msra.mxu0 0.0
        %620 = vmatprep.subr.mxu0 0.0
        %621 = vmatpush2.msra.mxu0 0.0
        %622 = vmatprep.subr.mxu0 0.0
        %623 = vmatpush2.msra.mxu0 0.0
        %624 = vmatprep.subr.mxu0 0.0
        %625 = vmatpush2.msra.mxu0 0.0
        %626 = vmatprep.subr.mxu0 0.0
        %627 = vmatpush2.msra.mxu0 0.0
        %628 = vmatprep.subr.mxu0 0.0
        %629 = vmatpush2.msra.mxu0 0.0
        %630 = vmatprep.subr.mxu0 0.0
        %631 = vmatpush2.msra.mxu0 0.0
        %632 = vmatprep.subr.mxu0 0.0
        %633 = vmatpush2.msra.mxu0 0.0
        %634 = vmatprep.subr.mxu0 0.0
        %635 = vmatpush2.msra.mxu0 0.0
        %636 = vmatprep.subr.mxu0 0.0
        %637 = vmatpush2.msra.mxu0 0.0
        %638 = vmatprep.subr.mxu0 0.0
        %639 = vmatpush2.msra.mxu0 0.0
        %640 = vmatprep.subr.mxu0 0.0
        %641 = vmatpush2.msra.mxu0 0.0
        %642 = vmatprep.subr.mxu0 0.0
        %643 = vmatpush2.msra.mxu0 0.0
        %644 = vmatprep.subr.mxu0 0.0
        %645 = vmatpush2.msra.mxu0 0.0
        %646 = vmatprep.subr.mxu0 0.0
        %647 = vmatpush2.msra.mxu0 0.0
        %648 = vmatprep.mubr.f32.mxu0 0.0
        %649 = vmatmul.mubr.f32.gmra.mxu0 %v348
        %v650 = vpop.f32.mrf.mxu0
        %v651 = vadd.f32 %v576, %v650
        %v652 = vpop.f32.mrf.mxu0
        %653 = vmatprep.mubr.f32.mxu0 0.0
        %654 = vmatmul.mubr.f32.gmra.mxu0 %v353
        %v655 = vpop.f32.mrf.mxu0
        %v656 = vadd.f32 %v581, %v655
        %v657 = vpop.f32.mrf.mxu0
        %658 = vdwg.mxu0
        %v659 = vld [vmem:[%s1] sm:$0xff]
        %v660 = vld [vmem:[%s1 + $0x8] sm:$0xff]
        %663 = vrot.lane.b32.xlu0 %v651, 96
        %v664 = vpop.permute.xlu0 %663
        %665 = vrot.lane.b32.xlu0 %v656, 96
        %v666 = vpop.permute.xlu0 %665
        %vm669 = vcmask 130048
        %v671 = vsel %vm669, %v659, 0
        %v674 = vsel %vm669, %v660, 0
        %676 = vmatprep.subr.mxu0 0.0
        %677 = vmatpush1.msra.mxu0 0.0
        %678 = vmatprep.subr.mxu0 0.0
        %679 = vmatpush1.msra.mxu0 0.0
        %680 = vmatprep.subr.mxu0 0.0
        %681 = vmatpush1.msra.mxu0 0.0
        %682 = vmatprep.subr.mxu0 0.0
        %683 = vmatpush1.msra.mxu0 0.0
        %684 = vmatprep.subr.mxu0 0.0
        %685 = vmatpush1.msra.mxu0 0.0
        %686 = vmatprep.subr.mxu0 0.0
        %687 = vmatpush1.msra.mxu0 0.0
        %688 = vmatprep.subr.mxu0 0.0
        %689 = vmatpush1.msra.mxu0 0.0
        %690 = vmatprep.subr.mxu0 0.0
        %691 = vmatpush1.msra.mxu0 0.0
        %692 = vmatprep.subr.mxu0 0.0
        %693 = vmatpush1.msra.mxu0 0.0
        %694 = vmatprep.subr.mxu0 0.0
        %695 = vmatpush1.msra.mxu0 0.0
        %696 = vmatprep.subr.mxu0 0.0
        %697 = vmatpush1.msra.mxu0 0.0
        %698 = vmatprep.subr.mxu0 0.0
        %699 = vmatpush1.msra.mxu0 0.0
        %700 = vmatprep.subr.mxu0 0.0
        %701 = vmatpush1.msra.mxu0 0.0
        %702 = vmatprep.subr.mxu0 0.0
        %703 = vmatpush1.msra.mxu0 0.0
        %704 = vmatprep.subr.mxu0 0.0
        %705 = vmatpush1.msra.mxu0 %v666
        %706 = vmatprep.subr.mxu0 0.0
        %707 = vmatpush1.msra.mxu0 %v664
        %708 = vmatprep.subr.mxu0 0.0
        %709 = vmatpush2.msra.mxu0 0.0
        %710 = vmatprep.subr.mxu0 0.0
        %711 = vmatpush2.msra.mxu0 0.0
        %712 = vmatprep.subr.mxu0 0.0
        %713 = vmatpush2.msra.mxu0 0.0
        %714 = vmatprep.subr.mxu0 0.0
        %715 = vmatpush2.msra.mxu0 0.0
        %716 = vmatprep.subr.mxu0 0.0
        %717 = vmatpush2.msra.mxu0 0.0
        %718 = vmatprep.subr.mxu0 0.0
        %719 = vmatpush2.msra.mxu0 0.0
        %720 = vmatprep.subr.mxu0 0.0
        %721 = vmatpush2.msra.mxu0 0.0
        %722 = vmatprep.subr.mxu0 0.0
        %723 = vmatpush2.msra.mxu0 0.0
        %724 = vmatprep.subr.mxu0 0.0
        %725 = vmatpush2.msra.mxu0 0.0
        %726 = vmatprep.subr.mxu0 0.0
        %727 = vmatpush2.msra.mxu0 0.0
        %728 = vmatprep.subr.mxu0 0.0
        %729 = vmatpush2.msra.mxu0 0.0
        %730 = vmatprep.subr.mxu0 0.0
        %731 = vmatpush2.msra.mxu0 0.0
        %732 = vmatprep.subr.mxu0 0.0
        %733 = vmatpush2.msra.mxu0 0.0
        %734 = vmatprep.subr.mxu0 0.0
        %735 = vmatpush2.msra.mxu0 0.0
        %736 = vmatprep.subr.mxu0 0.0
        %737 = vmatpush2.msra.mxu0 0.0
        %738 = vmatprep.subr.mxu0 0.0
        %739 = vmatpush2.msra.mxu0 0.0
        %740 = vmatprep.mubr.f32.mxu0 0.0
        %741 = vmatmul.mubr.f32.gmra.mxu0 %v671
        %v742 = vpop.f32.mrf.mxu0
        %v743 = vadd.f32 %v651, %v742
        %v744 = vpop.f32.mrf.mxu0
        %745 = vmatprep.mubr.f32.mxu0 0.0
        %746 = vmatmul.mubr.f32.gmra.mxu0 %v674
        %v747 = vpop.f32.mrf.mxu0
        %v748 = vadd.f32 %v656, %v747
        %v749 = vpop.f32.mrf.mxu0
        %750 = vdwg.mxu0
        %v751 = vld [vmem:[%s3] sm:$0x1]
        %v753 = vlaneseq
        %v754 = vshrl.u32 %v753, 7
        %v755 = vsub.s32 0, %v754
        %v756 = vrot.slane %v751, %v755
        %v758 = vadd.f32 %v743, %v756
        %v759 = vadd.f32 %v748, %v756
        %v760 = vmax.f32 %v758, 0.0
        %v761 = vmax.f32 %v759, 0.0
        %v762 = vld [vmem:[%s4] sm:$0xff]
        %v763 = vld [vmem:[%s4 + $0x8] sm:$0xff]
        %v764 = vld [vmem:[%s4 + $0x10] sm:$0xff]
        %v765 = vld [vmem:[%s4 + $0x18] sm:$0xff]
        %vm766 = vcmask 261120
        %v768 = vsel %vm766, %v760, 0
        %v771 = vsel %vm766, %v761, 0
        %773 = vmatprep.subr.mxu0 0.0
        %774 = vmatpush1.msra.mxu0 0.0
        %775 = vmatprep.subr.mxu0 0.0
        %776 = vmatpush1.msra.mxu0 0.0
        %777 = vmatprep.subr.mxu0 0.0
        %778 = vmatpush1.msra.mxu0 0.0
        %779 = vmatprep.subr.mxu0 0.0
        %780 = vmatpush1.msra.mxu0 0.0
        %781 = vmatprep.subr.mxu0 0.0
        %782 = vmatpush1.msra.mxu0 0.0
        %783 = vmatprep.subr.mxu0 0.0
        %784 = vmatpush1.msra.mxu0 0.0
        %785 = vmatprep.subr.mxu0 0.0
        %786 = vmatpush1.msra.mxu0 0.0
        %787 = vmatprep.subr.mxu0 0.0
        %788 = vmatpush1.msra.mxu0 0.0
        %789 = vmatprep.subr.mxu0 0.0
        %790 = vmatpush1.msra.mxu0 0.0
        %791 = vmatprep.subr.mxu0 0.0
        %792 = vmatpush1.msra.mxu0 0.0
        %793 = vmatprep.subr.mxu0 0.0
        %794 = vmatpush1.msra.mxu0 0.0
        %795 = vmatprep.subr.mxu0 0.0
        %796 = vmatpush1.msra.mxu0 0.0
        %797 = vmatprep.subr.mxu0 0.0
        %798 = vmatpush1.msra.mxu0 %v765
        %799 = vmatprep.subr.mxu0 0.0
        %800 = vmatpush1.msra.mxu0 %v764
        %801 = vmatprep.subr.mxu0 0.0
        %802 = vmatpush1.msra.mxu0 %v763
        %803 = vmatprep.subr.mxu0 0.0
        %804 = vmatpush1.msra.mxu0 %v762
        %805 = vmatprep.subr.mxu0 0.0
        %806 = vmatpush2.msra.mxu0 0.0
        %807 = vmatprep.subr.mxu0 0.0
        %808 = vmatpush2.msra.mxu0 0.0
        %809 = vmatprep.subr.mxu0 0.0
        %810 = vmatpush2.msra.mxu0 0.0
        %811 = vmatprep.subr.mxu0 0.0
        %812 = vmatpush2.msra.mxu0 0.0
        %813 = vmatprep.subr.mxu0 0.0
        %814 = vmatpush2.msra.mxu0 0.0
        %815 = vmatprep.subr.mxu0 0.0
        %816 = vmatpush2.msra.mxu0 0.0
        %817 = vmatprep.subr.mxu0 0.0
        %818 = vmatpush2.msra.mxu0 0.0
        %819 = vmatprep.subr.mxu0 0.0
        %820 = vmatpush2.msra.mxu0 0.0
        %821 = vmatprep.subr.mxu0 0.0
        %822 = vmatpush2.msra.mxu0 0.0
        %823 = vmatprep.subr.mxu0 0.0
        %824 = vmatpush2.msra.mxu0 0.0
        %825 = vmatprep.subr.mxu0 0.0
        %826 = vmatpush2.msra.mxu0 0.0
        %827 = vmatprep.subr.mxu0 0.0
        %828 = vmatpush2.msra.mxu0 0.0
        %829 = vmatprep.subr.mxu0 0.0
        %830 = vmatpush2.msra.mxu0 0.0
        %831 = vmatprep.subr.mxu0 0.0
        %832 = vmatpush2.msra.mxu0 0.0
        %833 = vmatprep.subr.mxu0 0.0
        %834 = vmatpush2.msra.mxu0 0.0
        %835 = vmatprep.subr.mxu0 0.0
        %836 = vmatpush2.msra.mxu0 0.0
        %837 = vmatprep.mubr.f32.mxu0 0.0
        %838 = vmatmul.mubr.f32.gmra.mxu0 %v768
        %v839 = vpop.f32.mrf.mxu0
        %v840 = vadd.f32 0.0, %v839
        %v841 = vpop.f32.mrf.mxu0
        %842 = vmatprep.mubr.f32.mxu0 0.0
        %843 = vmatmul.mubr.f32.gmra.mxu0 %v771
        %v844 = vpop.f32.mrf.mxu0
        %v845 = vadd.f32 0.0, %v844
        %v846 = vpop.f32.mrf.mxu0
        %847 = vdwg.mxu0
        %v848 = vld [vmem:[%s5] sm:$0x1]
        %v850 = vlaneseq
        %v851 = vshrl.u32 %v850, 7
        %v852 = vsub.s32 0, %v851
        %v853 = vrot.slane %v848, %v852
        %855 = vmatprep.subr.mxu0 0.0
        %856 = vmatpush1.msra.mxu0 0.0
        %857 = vmatprep.subr.mxu0 0.0
        %858 = vmatpush1.msra.mxu0 0.0
        %859 = vmatprep.subr.mxu0 0.0
        %860 = vmatpush1.msra.mxu0 0.0
        %861 = vmatprep.subr.mxu0 0.0
        %862 = vmatpush1.msra.mxu0 0.0
        %863 = vmatprep.subr.mxu0 0.0
        %864 = vmatpush1.msra.mxu0 0.0
        %865 = vmatprep.subr.mxu0 0.0
        %866 = vmatpush1.msra.mxu0 0.0
        %867 = vmatprep.subr.mxu0 0.0
        %868 = vmatpush1.msra.mxu0 0.0
        %869 = vmatprep.subr.mxu0 0.0
        %870 = vmatpush1.msra.mxu0 0.0
        %871 = vmatprep.subr.mxu0 0.0
        %872 = vmatpush1.msra.mxu0 0.0
        %873 = vmatprep.subr.mxu0 0.0
        %874 = vmatpush1.msra.mxu0 0.0
        %875 = vmatprep.subr.mxu0 0.0
        %876 = vmatpush1.msra.mxu0 0.0
        %877 = vmatprep.subr.mxu0 0.0
        %878 = vmatpush1.msra.mxu0 0.0
        %879 = vmatprep.subr.mxu0 0.0
        %880 = vmatpush1.msra.mxu0 0.0
        %881 = vmatprep.subr.mxu0 0.0
        %882 = vmatpush1.msra.mxu0 0.0
        %883 = vmatprep.subr.mxu0 0.0
        %884 = vmatpush1.msra.mxu0 %v845
        %885 = vmatprep.subr.mxu0 0.0
        %886 = vmatpush1.msra.mxu0 %v840
        %887 = vmatprep.subr.mxu0 0.0
        %888 = vmatpush2.msra.mxu0 0.0
        %889 = vmatprep.subr.mxu0 0.0
        %890 = vmatpush2.msra.mxu0 0.0
        %891 = vmatprep.subr.mxu0 0.0
        %892 = vmatpush2.msra.mxu0 0.0
        %893 = vmatprep.subr.mxu0 0.0
        %894 = vmatpush2.msra.mxu0 0.0
        %895 = vmatprep.subr.mxu0 0.0
        %896 = vmatpush2.msra.mxu0 0.0
        %897 = vmatprep.subr.mxu0 0.0
        %898 = vmatpush2.msra.mxu0 0.0
        %899 = vmatprep.subr.mxu0 0.0
        %900 = vmatpush2.msra.mxu0 0.0
        %901 = vmatprep.subr.mxu0 0.0
        %902 = vmatpush2.msra.mxu0 0.0
        %903 = vmatprep.subr.mxu0 0.0
        %904 = vmatpush2.msra.mxu0 0.0
        %905 = vmatprep.subr.mxu0 0.0
        %906 = vmatpush2.msra.mxu0 0.0
        %907 = vmatprep.subr.mxu0 0.0
        %908 = vmatpush2.msra.mxu0 0.0
        %909 = vmatprep.subr.mxu0 0.0
        %910 = vmatpush2.msra.mxu0 0.0
        %911 = vmatprep.subr.mxu0 0.0
        %912 = vmatpush2.msra.mxu0 0.0
        %913 = vmatprep.subr.mxu0 0.0
        %914 = vmatpush2.msra.mxu0 0.0
        %915 = vmatprep.subr.mxu0 0.0
        %916 = vmatpush2.msra.mxu0 0.0
        %917 = vmatprep.subr.mxu0 0.0
        %918 = vmatpush2.msra.mxu0 0.0
        %919 = vmatprep.mubr.f32.mxu0 0.0
        %920 = vmatmul.mubr.f32.gmra.mxu0 %v671
        %v921 = vpop.f32.mrf.mxu0
        %v922 = vadd.f32 %v853, %v921
        %v923 = vpop.f32.mrf.mxu0
        %924 = vmatprep.mubr.f32.mxu0 0.0
        %925 = vmatmul.mubr.f32.gmra.mxu0 %v674
        %v926 = vpop.f32.mrf.mxu0
        %v927 = vadd.f32 %v853, %v926
        %v928 = vpop.f32.mrf.mxu0
        %929 = vdwg.mxu0
        %v930 = vmax.f32 %v922, 0.0
        %v931 = vmax.f32 %v927, 0.0
        %932 = vst.msk [vmem:[%s245] sm:$0xff] %vm766, %v930
        %933 = vst.msk [vmem:[%s245 + $0x8] sm:$0xff] %vm766, %v931
        %s934 = sand.u32 %s159, 1
        %s935 = scalar_lea.sflag [#allocation4], %s934
        %s936 = sand.u32 %s159, 1
        %s937 = smul.addr %s936, 16
        %s938 = scalar_lea.vmem [#allocation3], %s937
        // Predicated region
        $region45: #{tpu_custom_call.1} parent=43 // pred_check
          %p939 = pneg %p169
        $region46: #{tpu_custom_call.1} parent=43 // pred_check_branch
          %941 = sbr.rel (%p939) target = $region48
        $region47: #{tpu_custom_call.1} parent=43 // pred_region
          %s942 = smul.u32 2, %s20
          %s944 = ssub.s32 256, 256
          %945 = vsyncadd %s935, %s944
          %s946 = smul.addr %s942, 128
          %s947 = scalar_lea.hbm %s6, %s946
          %s948 = sshll.u32 %s938, 4
          %s949 = int_to_ptr.vmem [resolvable:$true] %s948
          %954 = dma.vmem_to_hbm [thread:$0]  %s949, 256, %s947, %s935, 128, 128, 8
        $region48: #{tpu_custom_call.1} parent=43 // pred_fallthru
          _
      $region44: #{tpu_custom_call.1} parent=5 // pred_fallthru
        _
      %p955 = scmp.le.s32.totalorder 2, %s15
      // Predicated region
      $region49: #{tpu_custom_call.1} parent=5 // pred_check
        %p956 = pneg %p955
      $region50: #{tpu_custom_call.1} parent=5 // pred_check_branch
        %958 = sbr.rel (%p956) target = $region52
      $region51: #{tpu_custom_call.1} parent=5 // pred_region
        %s959 = ssub.s32 %s15, 2
        // Predicated region
        $region53: #{tpu_custom_call.1} parent=51 // pred_check
          %p960 = pneg %p175
        $region54: #{tpu_custom_call.1} parent=51 // pred_check_branch
          %962 = sbr.rel (%p960) target = $region56
        $region55: #{tpu_custom_call.1} parent=51 // pred_region
          %s963 = sand.u32 %s160, 1
          %s964 = scalar_lea.sflag [#allocation4], %s963
          %s965 = sand.u32 %s160, 1
          %s966 = smul.addr %s965, 16
          %s967 = scalar_lea.vmem [#allocation3], %s966
          %968 = dma.done %s964, 256
        $region56: #{tpu_custom_call.1} parent=51 // pred_fallthru
          _
      $region52: #{tpu_custom_call.1} parent=5 // pred_fallthru
        _
    $region6: #{tpu_custom_call.1} parent=1 // loop_footer
      %s19 = sadd.s32 1, %s15
    $region7: #{tpu_custom_call.1} parent=1 // loop_footer_branch
      %14 = sbr.rel target = $region3
    $region8: #{tpu_custom_call.1} parent=1 // loop_exit
      _
    %969 = vsyncpa [#allocation4], 1
    %s970 = scalar_lea.sflag [#allocation4], 1
    %971 = vsyncpa %s970, 1

</llo_original>
